<compile_context>
chip_gen: v6e
topology: v6e:2x2x1
jax: 0.10.0
libtpu: 0.0.40
codegen_flags: <defaults>
</compile_context>

<pallas_src>
import math
import jax
import jax.numpy as jnp
from jax.experimental import pallas as pl
from jax.experimental.pallas import tpu as pltpu

_SQRT_2_OVER_PI = math.sqrt(2.0 / math.pi)


def ffn_kernel(x_ref, w1_ref, b1_ref, w2_ref, b2_ref, o_ref, acc_ref):
    # x_ref:  (tm, d_model)      w1_ref: (d_model, tff)    b1_ref: (1, tff)
    # w2_ref: (tff, d_model)     b2_ref: (1, d_model)
    # o_ref:  (tm, d_model)      acc_ref: (tm, d_model) f32 scratch
    j = pl.program_id(1)

    @pl.when(j == 0)
    def _():
        acc_ref[...] = jnp.zeros_like(acc_ref)

    # h = x @ W1 slab (plain A@B, K-major weights), f32 accumulation on the MXU.
    h = jnp.dot(x_ref[...], w1_ref[...], preferred_element_type=jnp.float32)
    h = h + b1_ref[...].astype(jnp.float32)

    # tanh-approx GELU (exact formula from the PyTorch GELU module), f32 on VPU/EUP.
    inner = _SQRT_2_OVER_PI * h * (1.0 + 0.044715 * (h * h))
    g = 0.5 * h * (1.0 + jnp.tanh(inner))

    # Dropout: identity in eval mode.

    # Partial y = g @ W2 slab; cast g to the weight dtype so bf16 weights hit the
    # native bf16 MXU path (f32 weights stay f32).
    g = g.astype(w2_ref.dtype)
    acc_ref[...] += jnp.dot(g, w2_ref[...], preferred_element_type=jnp.float32)

    @pl.when(j == pl.num_programs(1) - 1)
    def _():
        y = acc_ref[...] + b2_ref[...].astype(jnp.float32)
        o_ref[...] = y.astype(o_ref.dtype)


def _round_up(x, m):
    return ((x + m - 1) // m) * m


def _vmem_capacity_bytes():
    # Generation-aware cap (v5e/v6e: 128 MiB, v7x: 64 MiB per TensorCore).
    try:
        cap = int(getattr(pltpu.get_tpu_info(), "vmem_capacity_bytes", 0) or 0)
        if cap > 0:
            return cap
    except Exception:  # hardware-info query only; never masks kernel compile errors
        pass
    return 64 * 1024 * 1024  # conservative fallback: v7x per-TC physical VMEM


def _choose_tiles(M, d_model, d_ff, x_itemsize, w_itemsize, vmem_cap, tff_override):
    # --- row tile ---
    row_align = 8 * max(1, 4 // x_itemsize)  # f32 -> 8, bf16 -> 16, int8 -> 32 sublanes
    if M < 256:
        tm = _round_up(M, row_align)
    else:
        # Target 256 (2x256x256 MXU on v6e/v7x) but keep >= 2 row-grid steps so the
        # "parallel" axis can feed both TensorCores on v7x.
        tm = min(256, _round_up(-(-M // 2), 128))
        tm = _round_up(tm, row_align)

    # --- hidden (d_ff) tile ---
    if tff_override is not None:
        tff = tff_override
        assert tff == d_ff or tff % 128 == 0, "tff must be d_ff or a multiple of 128"
    else:
        resident_bytes = 2 * 2 * d_ff * d_model * w_itemsize  # both weights, dbl-buffered
        if d_ff <= 512 or resident_bytes <= vmem_cap // 4:
            tff = d_ff  # single ff step; weights effectively resident
        else:
            tff = 512   # multiple of 256 (MXU) and 128 (lane tiling)
    return tm, tff


def _ffn_call(x2d, w1k, b1_2d, w2k, b2_2d, *, tm, tff, out_dtype, vmem_cap):
    Mp, d_model = x2d.shape
    d_ffp = w1k.shape[1]
    n_rows = Mp // tm
    n_ff = d_ffp // tff

    x_item = jnp.dtype(x2d.dtype).itemsize
    w_item = jnp.dtype(w1k.dtype).itemsize

    est = (
        2 * tm * d_model * x_item          # x row tile (double-buffer budget)
        + 2 * tm * d_model * x_item        # output tile (double-buffered)
        + tm * d_model * 4                 # f32 accumulator scratch
        + 2 * d_model * tff * w_item       # W1 slab (double-buffered)
        + 2 * tff * d_model * w_item       # W2 slab (double-buffered)
        + 2 * (tff + d_model) * w_item     # bias slabs
        + 2 * tm * tff * 4                 # f32 h / g intermediates
    )
    vmem_limit = max(int(est * 1.5), 16 * 1024 * 1024)
    vmem_limit = min(vmem_limit, int(vmem_cap * 0.9))  # never exceed physical VMEM

    cost = pl.CostEstimate(
        flops=4 * Mp * d_model * d_ffp,                     # two (M, d_model, d_ff) matmuls
        transcendentals=Mp * d_ffp,                         # tanh per hidden element
        bytes_accessed=(2 * Mp * d_model * x_item
                        + (2 * d_ffp * d_model + d_ffp + d_model) * w_item),
    )

    return pl.pallas_call(
        ffn_kernel,
        out_shape=jax.ShapeDtypeStruct((Mp, d_model), out_dtype),
        grid_spec=pltpu.PrefetchScalarGridSpec(
            num_scalar_prefetch=0,
            grid=(n_rows, n_ff),                             # rows parallel, d_ff reduction last
            in_specs=[
                pl.BlockSpec((tm, d_model), lambda i, j: (i, 0)),   # x tile (resident over j)
                pl.BlockSpec((d_model, tff), lambda i, j: (0, j)),  # W1 slab, K-major
                pl.BlockSpec((1, tff), lambda i, j: (0, j)),        # b1 slab
                pl.BlockSpec((tff, d_model), lambda i, j: (j, 0)),  # W2 slab, K-major
                pl.BlockSpec((1, d_model), lambda i, j: (0, 0)),    # b2
            ],
            out_specs=pl.BlockSpec((tm, d_model), lambda i, j: (i, 0)),
            scratch_shapes=[pltpu.VMEM((tm, d_model), jnp.float32)],
        ),
        compiler_params=pltpu.CompilerParams(
            dimension_semantics=("parallel", "arbitrary"),
            vmem_limit_bytes=vmem_limit,
        ),
        cost_estimate=cost,
    )(x2d, w1k, b1_2d, w2k, b2_2d)


def positionwise_feed_forward(x, w1, b1, w2, b2, *, compute_dtype=None, tff=None):
    """BERT-style FFN: W2 @ GELU(W1 @ x + b1) + b2 (eval-mode dropout = identity).

    x:  (B, S, d_model)
    w1: (d_ff, d_model), b1: (d_ff,)   (PyTorch nn.Linear layout)
    w2: (d_model, d_ff), b2: (d_model,)
    compute_dtype: optional (e.g. jnp.bfloat16) — cast matmul operands; f32 accumulation.
    tff: optional override of the hidden-dim tile (must be d_ff or a multiple of 128).
    """
    B, S, d_model = x.shape
    d_ff = w1.shape[0]
    M = B * S
    out_dtype = x.dtype

    if compute_dtype is not None:
        x = x.astype(compute_dtype)
        w1 = w1.astype(compute_dtype)
        w2 = w2.astype(compute_dtype)

    x_item = jnp.dtype(x.dtype).itemsize
    w_item = jnp.dtype(w1.dtype).itemsize
    vmem_cap = _vmem_capacity_bytes()
    tm, tff = _choose_tiles(M, d_model, d_ff, x_item, w_item, vmem_cap, tff)

    Mp = _round_up(M, tm)
    d_ffp = _round_up(d_ff, tff)

    x2d = x.reshape(M, d_model)
    if Mp != M:
        x2d = jnp.pad(x2d, ((0, Mp - M), (0, 0)))          # padded rows sliced off below

    # K-major weights: one-time HBM-layout transpose in the wrapper so both in-kernel
    # matmuls contract (lhs dim 1, rhs dim 0) — no XLU transpose inside the grid loop.
    w1k = w1.T                                              # (d_model, d_ff)
    w2k = w2.T                                              # (d_ff, d_model)
    b1_2d = b1.reshape(1, d_ff)
    if d_ffp != d_ff:
        # Zero padding is exact: GELU(0 + 0) = 0 and the padded W2 rows are zero.
        w1k = jnp.pad(w1k, ((0, 0), (0, d_ffp - d_ff)))
        w2k = jnp.pad(w2k, ((0, d_ffp - d_ff), (0, 0)))
        b1_2d = jnp.pad(b1_2d, ((0, 0), (0, d_ffp - d_ff)))
    b2_2d = b2.reshape(1, d_model)

    out2d = _ffn_call(x2d, w1k, b1_2d, w2k, b2_2d,
                      tm=tm, tff=tff, out_dtype=out_dtype, vmem_cap=vmem_cap)
    return out2d[:M].reshape(B, S, d_model)


def _reference(x, w1, b1, w2, b2):
    h = jnp.einsum("bsd,fd->bsf", x, w1) + b1
    c = math.sqrt(2.0 / math.pi)
    g = 0.5 * h * (1.0 + jnp.tanh(c * (h + 0.044715 * h ** 3)))
    return jnp.einsum("bsf,df->bsd", g, w2) + b2


def _make_params(key, d_model, d_ff):
    k1, k2, k3, k4 = jax.random.split(key, 4)
    bound1 = 1.0 / math.sqrt(d_model)
    w1 = jax.random.uniform(k1, (d_ff, d_model), jnp.float32, -bound1, bound1)
    b1 = jax.random.uniform(k2, (d_ff,), jnp.float32, -bound1, bound1)
    bound2 = 1.0 / math.sqrt(d_ff)
    w2 = jax.random.uniform(k3, (d_model, d_ff), jnp.float32, -bound2, bound2)
    b2 = jax.random.uniform(k4, (d_model,), jnp.float32, -bound2, bound2)
    return w1, b1, w2, b2


if __name__ == "__main__":
    key = jax.random.PRNGKey(0)
    kx, kp, kq = jax.random.split(key, 3)

    # 1) Small shapes consistent with the module: batch=2, seq=8, d_model=32, d_ff=64.
    B, S, d_model, d_ff = 2, 8, 32, 64
    x = jax.random.normal(kx, (B, S, d_model), dtype=jnp.float32)
    w1, b1, w2, b2 = _make_params(kp, d_model, d_ff)
    out = jax.block_until_ready(positionwise_feed_forward(x, w1, b1, w2, b2))
    ref = _reference(x, w1, b1, w2, b2)
    assert out.shape == (B, S, d_model)
    assert jnp.allclose(out, ref, atol=1e-4, rtol=1e-4), "mismatch vs reference"

    # 2) Row count not a multiple of the tile -> exercises the row padding path.
    x_odd = jax.random.normal(kx, (2, 5, d_model), dtype=jnp.float32)
    out_odd = jax.block_until_ready(positionwise_feed_forward(x_odd, w1, b1, w2, b2))
    ref_odd = _reference(x_odd, w1, b1, w2, b2)
    assert out_odd.shape == (2, 5, d_model)
    assert jnp.allclose(out_odd, ref_odd, atol=1e-4, rtol=1e-4), "mismatch (padded rows)"

    # 3) Force the streamed d_ff axis (tff < d_ff) -> exercises the pl.when accumulator.
    d_ff3 = 256
    w1s, b1s, w2s, b2s = _make_params(kq, d_model, d_ff3)
    out_s = jax.block_until_ready(
        positionwise_feed_forward(x, w1s, b1s, w2s, b2s, tff=128))
    ref_s = _reference(x, w1s, b1s, w2s, b2s)
    assert jnp.allclose(out_s, ref_s, atol=1e-4, rtol=1e-4), "mismatch (streamed d_ff)"

    print("KERNEL_OK")
</pallas_src>

<mosaic_0001>
module attributes {stable_mosaic.version = 11 : i64} {
  func.func @ffn_kernel(%arg0: i32, %arg1: i32, %arg2: memref<16x32xf32, #tpu.memory_space<vmem>>, %arg3: memref<32x64xf32, #tpu.memory_space<vmem>>, %arg4: memref<1x64xf32, #tpu.memory_space<vmem>>, %arg5: memref<64x32xf32, #tpu.memory_space<vmem>>, %arg6: memref<1x32xf32, #tpu.memory_space<vmem>>, %arg7: memref<16x32xf32, #tpu.memory_space<vmem>>, %arg8: memref<16x32xf32, #tpu.memory_space<vmem>>) attributes {dimension_semantics = [#tpu.dimension_semantics<parallel>, #tpu.dimension_semantics<arbitrary>], iteration_bounds = array<i64: 1, 1>, scalar_prefetch = 0 : i64, scratch_operands = 1 : i64, tpu.core_type = #tpu.core_type<tc>, window_params = [{transform_indices = @transform_0, window_bounds = array<i64: 16, 32>}, {transform_indices = @transform_1, window_bounds = array<i64: 32, 64>}, {transform_indices = @transform_2, window_bounds = array<i64: 1, 64>}, {transform_indices = @transform_3, window_bounds = array<i64: 64, 32>}, {pipeline_mode = #tpu.pipeline_mode<synchronous>, transform_indices = @transform_4, window_bounds = array<i64: 1, 32>}, {transform_indices = @transform_5, window_bounds = array<i64: 16, 32>}]} {
    %c0_i32 = arith.constant 0 : i32
    %0 = arith.cmpi eq, %arg1, %c0_i32 : i32
    %1 = arith.extui %0 : i1 to i32
    %c0_i32_0 = arith.constant 0 : i32
    %2 = arith.cmpi ne, %1, %c0_i32_0 : i32
    scf.if %2 {
      %cst_20 = arith.constant 0.000000e+00 : f32
      %31 = vector.broadcast %cst_20 : f32 to vector<16x32xf32>
      %c0_21 = arith.constant 0 : index
      %c0_22 = arith.constant 0 : index
      %32 = vector.load %arg8[%c0_21, %c0_22] : memref<16x32xf32, #tpu.memory_space<vmem>>, vector<16x32xf32>
      tpu.vector_store %arg8[%c0_21, %c0_22], %31 {strides = array<i32>} : memref<16x32xf32, #tpu.memory_space<vmem>>, vector<16x32xf32>,
    } else {
    }
    %c0 = arith.constant 0 : index
    %c0_1 = arith.constant 0 : index
    %3 = vector.load %arg2[%c0, %c0_1] : memref<16x32xf32, #tpu.memory_space<vmem>>, vector<16x32xf32>
    %c0_2 = arith.constant 0 : index
    %c0_3 = arith.constant 0 : index
    %4 = vector.load %arg3[%c0_2, %c0_3] : memref<32x64xf32, #tpu.memory_space<vmem>>, vector<32x64xf32>
    %cst = arith.constant dense<0.000000e+00> : vector<16x64xf32>
    %5 = tpu.matmul %3, %4, %cst {dimension_numbers = #tpu.dot_dimension_numbers<[1], [0], [0], [1], [0, 0, 1, 1], [], []>} : vector<16x32xf32>, vector<32x64xf32>, vector<16x64xf32> -> vector<16x64xf32>
    %c0_4 = arith.constant 0 : index
    %c0_5 = arith.constant 0 : index
    %6 = vector.load %arg4[%c0_4, %c0_5] : memref<1x64xf32, #tpu.memory_space<vmem>>, vector<1x64xf32>
    %7 = vector.broadcast %6 : vector<1x64xf32> to vector<16x64xf32>
    %8 = arith.addf %5, %7 : vector<16x64xf32>
    %cst_6 = arith.constant 0.797884583 : f32
    %9 = vector.broadcast %cst_6 : f32 to vector<16x64xf32>
    %10 = arith.mulf %9, %8 : vector<16x64xf32>
    %11 = arith.mulf %8, %8 : vector<16x64xf32>
    %cst_7 = arith.constant 4.471500e-02 : f32
    %12 = vector.broadcast %cst_7 : f32 to vector<16x64xf32>
    %13 = arith.mulf %12, %11 : vector<16x64xf32>
    %cst_8 = arith.constant 1.000000e+00 : f32
    %14 = vector.broadcast %cst_8 : f32 to vector<16x64xf32>
    %15 = arith.addf %14, %13 : vector<16x64xf32>
    %16 = arith.mulf %10, %15 : vector<16x64xf32>
    %cst_9 = arith.constant 5.000000e-01 : f32
    %17 = vector.broadcast %cst_9 : f32 to vector<16x64xf32>
    %18 = arith.mulf %17, %8 : vector<16x64xf32>
    %19 = math.tanh %16 : vector<16x64xf32>
    %cst_10 = arith.constant 1.000000e+00 : f32
    %20 = vector.broadcast %cst_10 : f32 to vector<16x64xf32>
    %21 = arith.addf %20, %19 : vector<16x64xf32>
    %22 = arith.mulf %18, %21 : vector<16x64xf32>
    %c0_11 = arith.constant 0 : index
    %c0_12 = arith.constant 0 : index
    %23 = vector.load %arg8[%c0_11, %c0_12] : memref<16x32xf32, #tpu.memory_space<vmem>>, vector<16x32xf32>
    %c0_13 = arith.constant 0 : index
    %c0_14 = arith.constant 0 : index
    %24 = vector.load %arg5[%c0_13, %c0_14] : memref<64x32xf32, #tpu.memory_space<vmem>>, vector<64x32xf32>
    %cst_15 = arith.constant dense<0.000000e+00> : vector<16x32xf32>
    %25 = tpu.matmul %22, %24, %cst_15 {dimension_numbers = #tpu.dot_dimension_numbers<[1], [0], [0], [1], [0, 0, 1, 1], [], []>} : vector<16x64xf32>, vector<64x32xf32>, vector<16x32xf32> -> vector<16x32xf32>
    %26 = arith.addf %23, %25 : vector<16x32xf32>
    %c0_16 = arith.constant 0 : index
    %c0_17 = arith.constant 0 : index
    %27 = vector.load %arg8[%c0_16, %c0_17] : memref<16x32xf32, #tpu.memory_space<vmem>>, vector<16x32xf32>
    tpu.vector_store %arg8[%c0_16, %c0_17], %26 {strides = array<i32>} : memref<16x32xf32, #tpu.memory_space<vmem>>, vector<16x32xf32>,
    %c0_i32_18 = arith.constant 0 : i32
    %28 = arith.cmpi eq, %arg1, %c0_i32_18 : i32
    %29 = arith.extui %28 : i1 to i32
    %c0_i32_19 = arith.constant 0 : i32
    %30 = arith.cmpi ne, %29, %c0_i32_19 : i32
    scf.if %30 {
      %c0_20 = arith.constant 0 : index
      %c0_21 = arith.constant 0 : index
      %31 = vector.load %arg8[%c0_20, %c0_21] : memref<16x32xf32, #tpu.memory_space<vmem>>, vector<16x32xf32>
      %c0_22 = arith.constant 0 : index
      %c0_23 = arith.constant 0 : index
      %32 = vector.load %arg6[%c0_22, %c0_23] : memref<1x32xf32, #tpu.memory_space<vmem>>, vector<1x32xf32>
      %33 = vector.broadcast %32 : vector<1x32xf32> to vector<16x32xf32>
      %34 = arith.addf %31, %33 : vector<16x32xf32>
      %c0_24 = arith.constant 0 : index
      %c0_25 = arith.constant 0 : index
      %35 = vector.load %arg7[%c0_24, %c0_25] : memref<16x32xf32, #tpu.memory_space<vmem>>, vector<16x32xf32>
      tpu.vector_store %arg7[%c0_24, %c0_25], %34 {strides = array<i32>} : memref<16x32xf32, #tpu.memory_space<vmem>>, vector<16x32xf32>,
    } else {
    }
    return
  }
  func.func @transform_0(%arg0: i32, %arg1: i32) -> (i32, i32) {
    %c0_i32 = arith.constant 0 : i32
    %c0_i32_0 = arith.constant 0 : i32
    return %arg0, %c0_i32 : i32, i32
  }
  func.func @transform_1(%arg0: i32, %arg1: i32) -> (i32, i32) {
    %c0_i32 = arith.constant 0 : i32
    %c0_i32_0 = arith.constant 0 : i32
    return %c0_i32, %arg1 : i32, i32
  }
  func.func @transform_2(%arg0: i32, %arg1: i32) -> (i32, i32) {
    %c0_i32 = arith.constant 0 : i32
    %c0_i32_0 = arith.constant 0 : i32
    return %c0_i32, %arg1 : i32, i32
  }
  func.func @transform_3(%arg0: i32, %arg1: i32) -> (i32, i32) {
    %c0_i32 = arith.constant 0 : i32
    %c0_i32_0 = arith.constant 0 : i32
    return %arg1, %c0_i32 : i32, i32
  }
  func.func @transform_4(%arg0: i32, %arg1: i32) -> (i32, i32) {
    %c0_i32 = arith.constant 0 : i32
    %c0_i32_0 = arith.constant 0 : i32
    %c0_i32_1 = arith.constant 0 : i32
    return %c0_i32, %c0_i32_0 : i32, i32
  }
  func.func @transform_5(%arg0: i32, %arg1: i32) -> (i32, i32) {
    %c0_i32 = arith.constant 0 : i32
    %c0_i32_0 = arith.constant 0 : i32
    return %arg0, %c0_i32 : i32, i32
  }
}

</mosaic_0001>

<llo_original>
// kernel: tpu_custom_call.1
$region0: #{tpu_custom_call.1}
  #allocation0 [shape = 'u32[]', space=smem, size = 0x4, offset = 0x4, fixed_abs, tag = 'smem constant byte address 0x4 - core index']
  #allocation1 [shape = 'u32[144,128]{1,0:T(1,128)}', space=vmem, size = 0x12000, scoped, tag = 'internal scratch']
  #allocation2 [shape = 'f32[16,32]{1,0:T(8,128)}', space=vmem, size = 0x2000, scoped, tag = 'scratch operand']
  %s0 = inlined_call_operand.vmem [shape: f32[16,32], index: 0, kind: input, shape index: {}]
  %s1 = inlined_call_operand.vmem [shape: f32[32,64], index: 1, kind: input, shape index: {}]
  %s2 = inlined_call_operand.vmem [shape: f32[1,64], index: 2, kind: input, shape index: {}]
  %s3 = inlined_call_operand.vmem [shape: f32[64,32], index: 3, kind: input, shape index: {}]
  %s4 = inlined_call_operand.vmem [shape: f32[1,32], index: 4, kind: input, shape index: {}]
  %s5 = inlined_call_operand.hbm [shape: f32[16,32], index: 5, kind: output, shape index: {}]
  %s6 = sld [smem:[#allocation0]]
  $region38: #{tpu_custom_call.1} parent=0
    _
  %s8 = ssub.s32 1, %s6
  %s9 = scalar_select 0, %s8, %s6
  $region1: #{tpu_custom_call.1} parent=0
    #allocation3 [shape = 'u8[8192]{0}', space=vmem, size = 0x2000, scoped, tag = 'output window, operand 0, single buffered']
    #allocation4 [shape = 's32[1]{0}', space=sflag, size = 0x4, scoped, tag = 'scoped memory for tpu_custom_call.1']
    %10 = vsyncpa [#allocation4], 0
    // Predicated region
    $region2: #{tpu_custom_call.1} parent=1 // pred_check
      _
    $region3: #{tpu_custom_call.1} parent=1 // pred_check_branch
      %12 = sbr.rel (0) target = $region5
    $region4: #{tpu_custom_call.1} parent=1 // pred_region
      _
    $region5: #{tpu_custom_call.1} parent=1 // pred_fallthru
      _
    // Predicated region
    $region6: #{tpu_custom_call.1} parent=1 // pred_check
      _
    $region7: #{tpu_custom_call.1} parent=1 // pred_check_branch
      %14 = sbr.rel (0) target = $region9
    $region8: #{tpu_custom_call.1} parent=1 // pred_region
      _
    $region9: #{tpu_custom_call.1} parent=1 // pred_fallthru
      _
    // Predicated region
    $region10: #{tpu_custom_call.1} parent=1 // pred_check
      _
    $region11: #{tpu_custom_call.1} parent=1 // pred_check_branch
      %16 = sbr.rel (0) target = $region13
    $region12: #{tpu_custom_call.1} parent=1 // pred_region
      _
    $region13: #{tpu_custom_call.1} parent=1 // pred_fallthru
      _
    // Predicated region
    $region14: #{tpu_custom_call.1} parent=1 // pred_check
      _
    $region15: #{tpu_custom_call.1} parent=1 // pred_check_branch
      %18 = sbr.rel (0) target = $region17
    $region16: #{tpu_custom_call.1} parent=1 // pred_region
      _
    $region17: #{tpu_custom_call.1} parent=1 // pred_fallthru
      _
    // Predicated region
    $region18: #{tpu_custom_call.1} parent=1 // pred_check
      _
    $region19: #{tpu_custom_call.1} parent=1 // pred_check_branch
      %20 = sbr.rel (0) target = $region21
    $region20: #{tpu_custom_call.1} parent=1 // pred_region
      _
    $region21: #{tpu_custom_call.1} parent=1 // pred_fallthru
      _
    %p21 = scmp.eq.s32.totalorder 0, 0
    // Predicated region
    $region22: #{tpu_custom_call.1} parent=1 // pred_check
      %p22 = pneg %p21
    $region23: #{tpu_custom_call.1} parent=1 // pred_check_branch
      %24 = sbr.rel (%p22) target = $region25
    $region24: #{tpu_custom_call.1} parent=1 // pred_region
      %vm25 = vcmask 261120
      %26 = vst.msk [vmem:[#allocation2] sm:$0xff] %vm25, 0.0
      %27 = vst.msk [vmem:[#allocation2 + $0x8] sm:$0xff] %vm25, 0.0
    $region25: #{tpu_custom_call.1} parent=1 // pred_fallthru
      _
    %v28 = vld [vmem:[%s0] sm:$0xff]
    %v29 = vld [vmem:[%s0 + $0x8] sm:$0xff]
    %v30 = vld [vmem:[%s1] sm:$0xff]
    %v31 = vld [vmem:[%s1 + $0x8] sm:$0xff]
    %v32 = vld [vmem:[%s1 + $0x10] sm:$0xff]
    %v33 = vld [vmem:[%s1 + $0x18] sm:$0xff]
    %v34 = vld [vmem:[%s2] sm:$0x1]
    %v36 = vlaneseq
    %v37 = vshrl.u32 %v36, 7
    %v38 = vsub.s32 0, %v37
    %v39 = vrot.slane %v34, %v38
    %vm41 = vcmask 261120
    %v43 = vsel %vm41, %v28, 0
    %v46 = vsel %vm41, %v29, 0
    %48 = vmatprep.subr.mxu0 0.0
    %49 = vmatpush1.msra.mxu0 0.0
    %50 = vmatprep.subr.mxu0 0.0
    %51 = vmatpush1.msra.mxu0 0.0
    %52 = vmatprep.subr.mxu0 0.0
    %53 = vmatpush1.msra.mxu0 0.0
    %54 = vmatprep.subr.mxu0 0.0
    %55 = vmatpush1.msra.mxu0 0.0
    %56 = vmatprep.subr.mxu0 0.0
    %57 = vmatpush1.msra.mxu0 0.0
    %58 = vmatprep.subr.mxu0 0.0
    %59 = vmatpush1.msra.mxu0 0.0
    %60 = vmatprep.subr.mxu0 0.0
    %61 = vmatpush1.msra.mxu0 0.0
    %62 = vmatprep.subr.mxu0 0.0
    %63 = vmatpush1.msra.mxu0 0.0
    %64 = vmatprep.subr.mxu0 0.0
    %65 = vmatpush1.msra.mxu0 0.0
    %66 = vmatprep.subr.mxu0 0.0
    %67 = vmatpush1.msra.mxu0 0.0
    %68 = vmatprep.subr.mxu0 0.0
    %69 = vmatpush1.msra.mxu0 0.0
    %70 = vmatprep.subr.mxu0 0.0
    %71 = vmatpush1.msra.mxu0 0.0
    %72 = vmatprep.subr.mxu0 0.0
    %73 = vmatpush1.msra.mxu0 %v33
    %74 = vmatprep.subr.mxu0 0.0
    %75 = vmatpush1.msra.mxu0 %v32
    %76 = vmatprep.subr.mxu0 0.0
    %77 = vmatpush1.msra.mxu0 %v31
    %78 = vmatprep.subr.mxu0 0.0
    %79 = vmatpush1.msra.mxu0 %v30
    %80 = vmatprep.subr.mxu0 0.0
    %81 = vmatpush2.msra.mxu0 0.0
    %82 = vmatprep.subr.mxu0 0.0
    %83 = vmatpush2.msra.mxu0 0.0
    %84 = vmatprep.subr.mxu0 0.0
    %85 = vmatpush2.msra.mxu0 0.0
    %86 = vmatprep.subr.mxu0 0.0
    %87 = vmatpush2.msra.mxu0 0.0
    %88 = vmatprep.subr.mxu0 0.0
    %89 = vmatpush2.msra.mxu0 0.0
    %90 = vmatprep.subr.mxu0 0.0
    %91 = vmatpush2.msra.mxu0 0.0
    %92 = vmatprep.subr.mxu0 0.0
    %93 = vmatpush2.msra.mxu0 0.0
    %94 = vmatprep.subr.mxu0 0.0
    %95 = vmatpush2.msra.mxu0 0.0
    %96 = vmatprep.subr.mxu0 0.0
    %97 = vmatpush2.msra.mxu0 0.0
    %98 = vmatprep.subr.mxu0 0.0
    %99 = vmatpush2.msra.mxu0 0.0
    %100 = vmatprep.subr.mxu0 0.0
    %101 = vmatpush2.msra.mxu0 0.0
    %102 = vmatprep.subr.mxu0 0.0
    %103 = vmatpush2.msra.mxu0 0.0
    %104 = vmatprep.subr.mxu0 0.0
    %105 = vmatpush2.msra.mxu0 0.0
    %106 = vmatprep.subr.mxu0 0.0
    %107 = vmatpush2.msra.mxu0 0.0
    %108 = vmatprep.subr.mxu0 0.0
    %109 = vmatpush2.msra.mxu0 0.0
    %110 = vmatprep.subr.mxu0 0.0
    %111 = vmatpush2.msra.mxu0 0.0
    %112 = vmatprep.mubr.f32.mxu0 0.0
    %113 = vmatmul.mubr.f32.gmra.mxu0 %v43
    %v114 = vpop.f32.mrf.mxu0
    %v115 = vadd.f32 %v39, %v114
    %v116 = vpop.f32.mrf.mxu0
    %117 = vmatprep.mubr.f32.mxu0 0.0
    %118 = vmatmul.mubr.f32.gmra.mxu0 %v46
    %v119 = vpop.f32.mrf.mxu0
    %v120 = vadd.f32 %v39, %v119
    %v121 = vpop.f32.mrf.mxu0
    %122 = vdwg.mxu0
    %v123 = vmul.f32 %v115, 0.7978846
    %v124 = vmul.f32 %v120, 0.7978846
    %v125 = vmul.f32 %v115, %v115
    %v126 = vmul.f32 %v120, %v120
    %v127 = vmul.f32 %v125, 0.044715
    %v128 = vmul.f32 %v126, 0.044715
    %v129 = vadd.f32 %v127, 1.0
    %v130 = vadd.f32 %v128, 1.0
    %v131 = vmul.f32 %v123, %v129
    %v132 = vmul.f32 %v124, %v130
    %v133 = vmul.f32 %v115, 0.5
    %v134 = vmul.f32 %v120, 0.5
    %v135 = vtanh.pop %v131
    %v136 = vtanh.pop %v132
    %v137 = vadd.f32 %v135, 1.0
    %v138 = vadd.f32 %v136, 1.0
    %v139 = vmul.f32 %v133, %v137
    %v140 = vmul.f32 %v134, %v138
    %v141 = vld [vmem:[#allocation2] sm:$0xff]
    %v142 = vld [vmem:[#allocation2 + $0x8] sm:$0xff]
    %v143 = vld [vmem:[%s3] sm:$0xff]
    %v144 = vld [vmem:[%s3 + $0x8] sm:$0xff]
    %v145 = vld [vmem:[%s3 + $0x10] sm:$0xff]
    %v146 = vld [vmem:[%s3 + $0x18] sm:$0xff]
    %v147 = vld [vmem:[%s3 + $0x20] sm:$0xff]
    %v148 = vld [vmem:[%s3 + $0x28] sm:$0xff]
    %v149 = vld [vmem:[%s3 + $0x30] sm:$0xff]
    %v150 = vld [vmem:[%s3 + $0x38] sm:$0xff]
    %vm151 = vcmask 523264
    %v153 = vsel %vm151, %v139, 0
    %v156 = vsel %vm151, %v140, 0
    %158 = vmatprep.subr.mxu0 0.0
    %159 = vmatpush1.msra.mxu0 0.0
    %160 = vmatprep.subr.mxu0 0.0
    %161 = vmatpush1.msra.mxu0 0.0
    %162 = vmatprep.subr.mxu0 0.0
    %163 = vmatpush1.msra.mxu0 0.0
    %164 = vmatprep.subr.mxu0 0.0
    %165 = vmatpush1.msra.mxu0 0.0
    %166 = vmatprep.subr.mxu0 0.0
    %167 = vmatpush1.msra.mxu0 0.0
    %168 = vmatprep.subr.mxu0 0.0
    %169 = vmatpush1.msra.mxu0 0.0
    %170 = vmatprep.subr.mxu0 0.0
    %171 = vmatpush1.msra.mxu0 0.0
    %172 = vmatprep.subr.mxu0 0.0
    %173 = vmatpush1.msra.mxu0 0.0
    %174 = vmatprep.subr.mxu0 0.0
    %175 = vmatpush1.msra.mxu0 %v150
    %176 = vmatprep.subr.mxu0 0.0
    %177 = vmatpush1.msra.mxu0 %v149
    %178 = vmatprep.subr.mxu0 0.0
    %179 = vmatpush1.msra.mxu0 %v148
    %180 = vmatprep.subr.mxu0 0.0
    %181 = vmatpush1.msra.mxu0 %v147
    %182 = vmatprep.subr.mxu0 0.0
    %183 = vmatpush1.msra.mxu0 %v146
    %184 = vmatprep.subr.mxu0 0.0
    %185 = vmatpush1.msra.mxu0 %v145
    %186 = vmatprep.subr.mxu0 0.0
    %187 = vmatpush1.msra.mxu0 %v144
    %188 = vmatprep.subr.mxu0 0.0
    %189 = vmatpush1.msra.mxu0 %v143
    %190 = vmatprep.subr.mxu0 0.0
    %191 = vmatpush2.msra.mxu0 0.0
    %192 = vmatprep.subr.mxu0 0.0
    %193 = vmatpush2.msra.mxu0 0.0
    %194 = vmatprep.subr.mxu0 0.0
    %195 = vmatpush2.msra.mxu0 0.0
    %196 = vmatprep.subr.mxu0 0.0
    %197 = vmatpush2.msra.mxu0 0.0
    %198 = vmatprep.subr.mxu0 0.0
    %199 = vmatpush2.msra.mxu0 0.0
    %200 = vmatprep.subr.mxu0 0.0
    %201 = vmatpush2.msra.mxu0 0.0
    %202 = vmatprep.subr.mxu0 0.0
    %203 = vmatpush2.msra.mxu0 0.0
    %204 = vmatprep.subr.mxu0 0.0
    %205 = vmatpush2.msra.mxu0 0.0
    %206 = vmatprep.subr.mxu0 0.0
    %207 = vmatpush2.msra.mxu0 0.0
    %208 = vmatprep.subr.mxu0 0.0
    %209 = vmatpush2.msra.mxu0 0.0
    %210 = vmatprep.subr.mxu0 0.0
    %211 = vmatpush2.msra.mxu0 0.0
    %212 = vmatprep.subr.mxu0 0.0
    %213 = vmatpush2.msra.mxu0 0.0
    %214 = vmatprep.subr.mxu0 0.0
    %215 = vmatpush2.msra.mxu0 0.0
    %216 = vmatprep.subr.mxu0 0.0
    %217 = vmatpush2.msra.mxu0 0.0
    %218 = vmatprep.subr.mxu0 0.0
    %219 = vmatpush2.msra.mxu0 0.0
    %220 = vmatprep.subr.mxu0 0.0
    %221 = vmatpush2.msra.mxu0 0.0
    %222 = vmatprep.mubr.f32.mxu0 0.0
    %223 = vmatmul.mubr.f32.gmra.mxu0 %v153
    %v224 = vpop.f32.mrf.mxu0
    %v225 = vadd.f32 0.0, %v224
    %v226 = vpop.f32.mrf.mxu0
    %227 = vmatprep.mubr.f32.mxu0 0.0
    %228 = vmatmul.mubr.f32.gmra.mxu0 %v156
    %v229 = vpop.f32.mrf.mxu0
    %v230 = vadd.f32 0.0, %v229
    %v231 = vpop.f32.mrf.mxu0
    %232 = vdwg.mxu0
    %v233 = vadd.f32 %v141, %v225
    %v234 = vadd.f32 %v142, %v230
    %235 = vst.msk [vmem:[#allocation2] sm:$0xff] %vm41, %v233
    %236 = vst.msk [vmem:[#allocation2 + $0x8] sm:$0xff] %vm41, %v234
    // Predicated region
    $region26: #{tpu_custom_call.1} parent=1 // pred_check
      %p237 = pneg %p21
    $region27: #{tpu_custom_call.1} parent=1 // pred_check_branch
      %239 = sbr.rel (%p237) target = $region29
    $region28: #{tpu_custom_call.1} parent=1 // pred_region
      %v240 = vld [vmem:[#allocation2] sm:$0xff]
      %v241 = vld [vmem:[#allocation2 + $0x8] sm:$0xff]
      %v242 = vld [vmem:[%s4] sm:$0x1]
      %v244 = vlaneseq
      %v245 = vshrl.u32 %v244, 7
      %v246 = vsub.s32 0, %v245
      %v247 = vrot.slane %v242, %v246
      %v249 = vadd.f32 %v240, %v247
      %v250 = vadd.f32 %v241, %v247
      %251 = vst.msk [vmem:[#allocation3] sm:$0xff] %vm41, %v249
      %252 = vst.msk [vmem:[#allocation3 + $0x8] sm:$0xff] %vm41, %v250
    $region29: #{tpu_custom_call.1} parent=1 // pred_fallthru
      _
    // Predicated region
    $region30: #{tpu_custom_call.1} parent=1 // pred_check
      _
    $region31: #{tpu_custom_call.1} parent=1 // pred_check_branch
      %254 = sbr.rel (0) target = $region33
    $region32: #{tpu_custom_call.1} parent=1 // pred_region
      %s256 = ssub.s32 256, 256
      %257 = vsyncadd [#allocation4], %s256
      %s258 = sshll.u32 [#allocation3], 4
      %s259 = int_to_ptr.vmem [resolvable:$true] %s258
      %264 = dma.vmem_to_hbm [thread:$0]  %s259, 256, %s5, [#allocation4], 128, 128, 8
    $region33: #{tpu_custom_call.1} parent=1 // pred_fallthru
      _
    // Predicated region
    $region34: #{tpu_custom_call.1} parent=1 // pred_check
      _
    $region35: #{tpu_custom_call.1} parent=1 // pred_check_branch
      %266 = sbr.rel (0) target = $region37
    $region36: #{tpu_custom_call.1} parent=1 // pred_region
      %267 = dma.done [#allocation4], 256
    $region37: #{tpu_custom_call.1} parent=1 // pred_fallthru
      _
    %268 = vsyncpa [#allocation4], 1

</llo_original>
